<compile_context>
chip_gen: v6e
topology: v6e:2x2x1
jax: 0.10.0
libtpu: 0.0.40
codegen_flags: <defaults>
</compile_context>

<pallas_src>
import functools

import jax
import jax.numpy as jnp
from jax.experimental import pallas as pl
from jax.experimental.pallas import tpu as pltpu


LANES = 128   # batch maps to the lane (last) dim; batch tiles are multiples of 128
C_PAD = 8     # num_classes padded to one sublane group for the writeback


def _round_up(n, m):
    return ((n + m - 1) // m) * m


def _detect_tc_per_chip():
    # v7x has 2 TensorCores per chip; v5e/v6e have 1. Best-effort detection only:
    # on failure or unknown hardware fall back to the single-core path.
    try:
        kind = jax.devices()[0].device_kind.lower()
        if "v7" in kind or "7x" in kind:
            return 2
    except Exception:
        pass
    return 1


_TC_PER_CHIP = _detect_tc_per_chip()
# Only CORE_PARALLEL actually changes codegen for megacore; plain "parallel" vs
# "arbitrary" is a measured no-op, so keep the string on single-TC chips.
_BATCH_SEMANTICS = (pltpu.CORE_PARALLEL,) if _TC_PER_CHIP > 1 else ("parallel",)


def emg_mlp_kernel(xt_ref, w1_ref, b1_ref, w2_ref, b2_ref, w3_ref, b3_ref, out_ref):
    """Fused 3-layer MLP forward, feature-major (features on sublanes, batch on lanes).

    Each hidden layer is relu(W' @ x^T + b') where W'/b' already contain the
    eval-mode BatchNorm affine. Dropout is identity in eval mode.
    Matmul operands are bf16, accumulation and elementwise work are f32.
    """
    xt = xt_ref[...]                                                   # bf16 (D_in, TB)

    # Layer 1: (H1, D_in) @ (D_in, TB) -> (H1, TB)  [+ folded BN] + ReLU
    h1 = jnp.dot(w1_ref[...], xt, preferred_element_type=jnp.float32)
    h1 = jnp.maximum(h1 + b1_ref[...], 0.0)                            # f32

    # Layer 2: (H2, H1) @ (H1, TB) -> (H2, TB)  [+ folded BN] + ReLU
    h2 = jnp.dot(w2_ref[...], h1.astype(jnp.bfloat16),
                 preferred_element_type=jnp.float32)
    h2 = jnp.maximum(h2 + b2_ref[...], 0.0)                            # f32

    # Output layer: (C_PAD, H2) @ (H2, TB) -> (C_PAD, TB); rows >= num_classes are zero.
    out = jnp.dot(w3_ref[...], h2.astype(jnp.bfloat16),
                  preferred_element_type=jnp.float32)
    out_ref[...] = (out + b3_ref[...]).astype(out_ref.dtype)


def init_params(key, input_size, hidden_sizes=(128, 32), num_classes=3):
    """Deterministic synthetic parameters matching the PyTorch module shapes."""
    eps = 1e-5
    dims = [input_size, hidden_sizes[0], hidden_sizes[1], num_classes]
    keys = jax.random.split(key, 16)
    ki = iter(range(16))

    def linear(kw, kb, fan_in, fan_out):
        bound = 1.0 / jnp.sqrt(fan_in)
        w = jax.random.uniform(kw, (fan_in, fan_out), jnp.float32, -bound, bound)
        b = jax.random.uniform(kb, (1, fan_out), jnp.float32, -bound, bound)
        return w, b

    def bn(kg, kb, km, kv, feat):
        gamma = 1.0 + 0.1 * jax.random.normal(kg, (1, feat), jnp.float32)
        beta = 0.1 * jax.random.normal(kb, (1, feat), jnp.float32)
        running_mean = 0.1 * jax.random.normal(km, (1, feat), jnp.float32)
        running_var = jnp.abs(1.0 + 0.1 * jax.random.normal(kv, (1, feat), jnp.float32))
        s = gamma / jnp.sqrt(running_var + eps)
        t = beta - running_mean * s
        return s, t

    w1, b1 = linear(keys[next(ki)], keys[next(ki)], dims[0], dims[1])
    s1, t1 = bn(keys[next(ki)], keys[next(ki)], keys[next(ki)], keys[next(ki)], dims[1])
    w2, b2 = linear(keys[next(ki)], keys[next(ki)], dims[1], dims[2])
    s2, t2 = bn(keys[next(ki)], keys[next(ki)], keys[next(ki)], keys[next(ki)], dims[2])
    w3, b3 = linear(keys[next(ki)], keys[next(ki)], dims[2], dims[3])

    return (w1, b1, s1, t1, w2, b2, s2, t2, w3, b3)


def fold_and_pack_params(params, pad_classes=C_PAD):
    """Fold eval-mode BatchNorm into the Linear weights, transpose to feature-major
    ([out, in] like PyTorch storage) and pad the output layer to C_PAD sublanes.
    Matmul operands become bf16; biases stay f32 column vectors."""
    w1, b1, s1, t1, w2, b2, s2, t2, w3, b3 = params
    # y = (x @ w + b) * s + t  ==  x @ (w * s) + (b * s + t)
    w1t = (w1 * s1).T.astype(jnp.bfloat16)            # (H1, D_in)
    b1t = (b1 * s1 + t1).T.astype(jnp.float32)        # (H1, 1)
    w2t = (w2 * s2).T.astype(jnp.bfloat16)            # (H2, H1)
    b2t = (b2 * s2 + t2).T.astype(jnp.float32)        # (H2, 1)
    pad = pad_classes - w3.shape[1]
    w3t = jnp.pad(w3.T, ((0, pad), (0, 0))).astype(jnp.bfloat16)   # (C_PAD, H2)
    b3t = jnp.pad(b3.T, ((0, pad), (0, 0))).astype(jnp.float32)    # (C_PAD, 1)
    return (w1t, b1t, w2t, b2t, w3t, b3t)


@functools.partial(jax.jit, static_argnames=("num_classes", "block_batch"))
def emg_classifier_forward(x, folded_params, num_classes=3, block_batch=2048):
    """Batched forward. Batch lives on the lane dim; grid over batch tiles;
    weights stay VMEM-resident."""
    w1t, b1t, w2t, b2t, w3t, b3t = folded_params
    batch, d_in = x.shape
    c_pad = w3t.shape[0]

    # Lane-dense batch tile: multiple of 128, at most ~block_batch rows; on v7x force
    # at least 2 tiles (when batch allows) so both TensorCores get work.
    padded = _round_up(batch, LANES)
    n_tiles = pl.cdiv(padded, block_batch)
    if _TC_PER_CHIP > 1:
        n_tiles = min(_round_up(n_tiles, _TC_PER_CHIP), padded // LANES)
    tb = _round_up(pl.cdiv(padded, n_tiles), LANES)
    padded = _round_up(padded, tb)

    # Feature-major input (D_in, padded_batch): pad + transpose + bf16 cast fuse into
    # a single XLA pass; the kernel's input DMA then moves half the bytes.
    xt = jnp.pad(x, ((0, padded - batch), (0, 0))).T.astype(jnp.bfloat16)

    # Per-step VMEM: weights ~20 KB + double-buffered x/out tiles + f32 activations
    # (~1.5 MB at tb=2048) -- far under the 32 MiB scoped default on all generations.
    # Set vmem_limit_bytes explicitly only if tb is ever pushed past ~16K rows.
    out = pl.pallas_call(
        emg_mlp_kernel,
        out_shape=jax.ShapeDtypeStruct((c_pad, padded), jnp.float32),
        grid_spec=pltpu.PrefetchScalarGridSpec(
            num_scalar_prefetch=0,
            grid=(padded // tb,),
            in_specs=[
                pl.BlockSpec((d_in, tb), lambda i: (0, i)),   # x^T: tiled over batch lanes
                pl.BlockSpec(w1t.shape, lambda i: (0, 0)),    # weights/biases: resident
                pl.BlockSpec(b1t.shape, lambda i: (0, 0)),
                pl.BlockSpec(w2t.shape, lambda i: (0, 0)),
                pl.BlockSpec(b2t.shape, lambda i: (0, 0)),
                pl.BlockSpec(w3t.shape, lambda i: (0, 0)),
                pl.BlockSpec(b3t.shape, lambda i: (0, 0)),
            ],
            out_specs=pl.BlockSpec((c_pad, tb), lambda i: (0, i)),
        ),
        compiler_params=pltpu.CompilerParams(
            dimension_semantics=_BATCH_SEMANTICS,
        ),
    )(xt, w1t, b1t, w2t, b2t, w3t, b3t)

    # TODO(synk): input K=16 / hidden K=32 contractions are left unpadded (sub-128 MXU
    # depth); the kernel is bandwidth/overhead-bound, so K-padding would only add bytes.

    # (C_PAD, padded_batch) -> (batch, num_classes): trivial slice + transpose of a tiny array.
    return out[:num_classes, :batch].T


def reference_forward(x, params):
    """Original eval-mode semantics in f32 (un-folded BN), highest matmul precision."""
    w1, b1, s1, t1, w2, b2, s2, t2, w3, b3 = params
    hp = jax.lax.Precision.HIGHEST
    h1 = jnp.maximum((jnp.dot(x, w1, precision=hp) + b1) * s1 + t1, 0.0)
    h2 = jnp.maximum((jnp.dot(h1, w2, precision=hp) + b2) * s2 + t2, 0.0)
    return jnp.dot(h2, w3, precision=hp) + b3


if __name__ == "__main__":
    # TODO(synk): training-mode BatchNorm (batch statistics) and stochastic Dropout
    # are not implemented; this kernel reproduces the eval-mode forward pass.
    key = jax.random.PRNGKey(0)
    kx, kx2, kp = jax.random.split(key, 3)

    input_size = 16
    hidden_sizes = (128, 32)
    num_classes = 3

    params = init_params(kp, input_size, hidden_sizes, num_classes)
    folded = fold_and_pack_params(params)

    # Small batch (single grid step).
    batch = 8
    x = jax.random.normal(kx, (batch, input_size), jnp.float32)
    out = emg_classifier_forward(x, folded, num_classes=num_classes)
    out = jax.block_until_ready(out)
    ref = reference_forward(x, params)
    assert out.shape == (batch, num_classes)
    assert jnp.allclose(out, ref, atol=5e-2, rtol=5e-2), "mismatch vs JAX reference (small batch)"

    # Larger, non-multiple batch: exercises lane padding and resident weights.
    batch2 = 300
    x2 = jax.random.normal(kx2, (batch2, input_size), jnp.float32)
    out2 = emg_classifier_forward(x2, folded, num_classes=num_classes)
    out2 = jax.block_until_ready(out2)
    ref2 = reference_forward(x2, params)
    assert out2.shape == (batch2, num_classes)
    assert jnp.allclose(out2, ref2, atol=5e-2, rtol=5e-2), "mismatch vs JAX reference (batched)"

    print("KERNEL_OK")
</pallas_src>

<mosaic_0001>
module attributes {stable_mosaic.version = 11 : i64} {
  func.func @emg_mlp_kernel(%arg0: i32, %arg1: memref<16x128xbf16, #tpu.memory_space<vmem>>, %arg2: memref<128x16xbf16, #tpu.memory_space<vmem>>, %arg3: memref<128x1xf32, #tpu.memory_space<vmem>>, %arg4: memref<32x128xbf16, #tpu.memory_space<vmem>>, %arg5: memref<32x1xf32, #tpu.memory_space<vmem>>, %arg6: memref<8x32xbf16, #tpu.memory_space<vmem>>, %arg7: memref<8x1xf32, #tpu.memory_space<vmem>>, %arg8: memref<8x128xf32, #tpu.memory_space<vmem>>) attributes {dimension_semantics = [#tpu.dimension_semantics<parallel>], iteration_bounds = array<i64: 1>, scalar_prefetch = 0 : i64, scratch_operands = 0 : i64, tpu.core_type = #tpu.core_type<tc>, window_params = [{transform_indices = @transform_0, window_bounds = array<i64: 16, 128>}, {pipeline_mode = #tpu.pipeline_mode<synchronous>, transform_indices = @transform_1, window_bounds = array<i64: 128, 16>}, {pipeline_mode = #tpu.pipeline_mode<synchronous>, transform_indices = @transform_2, window_bounds = array<i64: 128, 1>}, {pipeline_mode = #tpu.pipeline_mode<synchronous>, transform_indices = @transform_3, window_bounds = array<i64: 32, 128>}, {pipeline_mode = #tpu.pipeline_mode<synchronous>, transform_indices = @transform_4, window_bounds = array<i64: 32, 1>}, {pipeline_mode = #tpu.pipeline_mode<synchronous>, transform_indices = @transform_5, window_bounds = array<i64: 8, 32>}, {pipeline_mode = #tpu.pipeline_mode<synchronous>, transform_indices = @transform_6, window_bounds = array<i64: 8, 1>}, {transform_indices = @transform_7, window_bounds = array<i64: 8, 128>}]} {
    %c0 = arith.constant 0 : index
    %c0_0 = arith.constant 0 : index
    %0 = vector.load %arg1[%c0, %c0_0] : memref<16x128xbf16, #tpu.memory_space<vmem>>, vector<16x128xbf16>
    %c0_1 = arith.constant 0 : index
    %c0_2 = arith.constant 0 : index
    %1 = vector.load %arg2[%c0_1, %c0_2] : memref<128x16xbf16, #tpu.memory_space<vmem>>, vector<128x16xbf16>
    %cst = arith.constant dense<0.000000e+00> : vector<128x128xf32>
    %2 = tpu.matmul %1, %0, %cst {dimension_numbers = #tpu.dot_dimension_numbers<[1], [0], [0], [1], [0, 0, 1, 1], [], []>} : vector<128x16xbf16>, vector<16x128xbf16>, vector<128x128xf32> -> vector<128x128xf32>
    %c0_3 = arith.constant 0 : index
    %c0_4 = arith.constant 0 : index
    %3 = vector.load %arg3[%c0_3, %c0_4] : memref<128x1xf32, #tpu.memory_space<vmem>>, vector<128x1xf32>
    %4 = vector.broadcast %3 : vector<128x1xf32> to vector<128x128xf32>
    %5 = arith.addf %2, %4 : vector<128x128xf32>
    %cst_5 = arith.constant 0.000000e+00 : f32
    %6 = vector.broadcast %cst_5 : f32 to vector<128x128xf32>
    %7 = arith.maximumf %5, %6 : vector<128x128xf32>
    %c0_6 = arith.constant 0 : index
    %c0_7 = arith.constant 0 : index
    %8 = vector.load %arg4[%c0_6, %c0_7] : memref<32x128xbf16, #tpu.memory_space<vmem>>, vector<32x128xbf16>
    %9 = arith.truncf %7 : vector<128x128xf32> to vector<128x128xbf16>
    %cst_8 = arith.constant dense<0.000000e+00> : vector<32x128xf32>
    %10 = tpu.matmul %8, %9, %cst_8 {dimension_numbers = #tpu.dot_dimension_numbers<[1], [0], [0], [1], [0, 0, 1, 1], [], []>} : vector<32x128xbf16>, vector<128x128xbf16>, vector<32x128xf32> -> vector<32x128xf32>
    %c0_9 = arith.constant 0 : index
    %c0_10 = arith.constant 0 : index
    %11 = vector.load %arg5[%c0_9, %c0_10] : memref<32x1xf32, #tpu.memory_space<vmem>>, vector<32x1xf32>
    %12 = vector.broadcast %11 : vector<32x1xf32> to vector<32x128xf32>
    %13 = arith.addf %10, %12 : vector<32x128xf32>
    %cst_11 = arith.constant 0.000000e+00 : f32
    %14 = vector.broadcast %cst_11 : f32 to vector<32x128xf32>
    %15 = arith.maximumf %13, %14 : vector<32x128xf32>
    %c0_12 = arith.constant 0 : index
    %c0_13 = arith.constant 0 : index
    %16 = vector.load %arg6[%c0_12, %c0_13] : memref<8x32xbf16, #tpu.memory_space<vmem>>, vector<8x32xbf16>
    %17 = arith.truncf %15 : vector<32x128xf32> to vector<32x128xbf16>
    %cst_14 = arith.constant dense<0.000000e+00> : vector<8x128xf32>
    %18 = tpu.matmul %16, %17, %cst_14 {dimension_numbers = #tpu.dot_dimension_numbers<[1], [0], [0], [1], [0, 0, 1, 1], [], []>} : vector<8x32xbf16>, vector<32x128xbf16>, vector<8x128xf32> -> vector<8x128xf32>
    %c0_15 = arith.constant 0 : index
    %c0_16 = arith.constant 0 : index
    %19 = vector.load %arg7[%c0_15, %c0_16] : memref<8x1xf32, #tpu.memory_space<vmem>>, vector<8x1xf32>
    %20 = vector.broadcast %19 : vector<8x1xf32> to vector<8x128xf32>
    %21 = arith.addf %18, %20 : vector<8x128xf32>
    %c0_17 = arith.constant 0 : index
    %c0_18 = arith.constant 0 : index
    %22 = vector.load %arg8[%c0_17, %c0_18] : memref<8x128xf32, #tpu.memory_space<vmem>>, vector<8x128xf32>
    tpu.vector_store %arg8[%c0_17, %c0_18], %21 {strides = array<i32>} : memref<8x128xf32, #tpu.memory_space<vmem>>, vector<8x128xf32>,
    return
  }
  func.func @transform_0(%arg0: i32) -> (i32, i32) {
    %c0_i32 = arith.constant 0 : i32
    %c0_i32_0 = arith.constant 0 : i32
    return %c0_i32, %arg0 : i32, i32
  }
  func.func @transform_1(%arg0: i32) -> (i32, i32) {
    %c0_i32 = arith.constant 0 : i32
    %c0_i32_0 = arith.constant 0 : i32
    %c0_i32_1 = arith.constant 0 : i32
    return %c0_i32, %c0_i32_0 : i32, i32
  }
  func.func @transform_2(%arg0: i32) -> (i32, i32) {
    %c0_i32 = arith.constant 0 : i32
    %c0_i32_0 = arith.constant 0 : i32
    %c0_i32_1 = arith.constant 0 : i32
    return %c0_i32, %c0_i32_0 : i32, i32
  }
  func.func @transform_3(%arg0: i32) -> (i32, i32) {
    %c0_i32 = arith.constant 0 : i32
    %c0_i32_0 = arith.constant 0 : i32
    %c0_i32_1 = arith.constant 0 : i32
    return %c0_i32, %c0_i32_0 : i32, i32
  }
  func.func @transform_4(%arg0: i32) -> (i32, i32) {
    %c0_i32 = arith.constant 0 : i32
    %c0_i32_0 = arith.constant 0 : i32
    %c0_i32_1 = arith.constant 0 : i32
    return %c0_i32, %c0_i32_0 : i32, i32
  }
  func.func @transform_5(%arg0: i32) -> (i32, i32) {
    %c0_i32 = arith.constant 0 : i32
    %c0_i32_0 = arith.constant 0 : i32
    %c0_i32_1 = arith.constant 0 : i32
    return %c0_i32, %c0_i32_0 : i32, i32
  }
  func.func @transform_6(%arg0: i32) -> (i32, i32) {
    %c0_i32 = arith.constant 0 : i32
    %c0_i32_0 = arith.constant 0 : i32
    %c0_i32_1 = arith.constant 0 : i32
    return %c0_i32, %c0_i32_0 : i32, i32
  }
  func.func @transform_7(%arg0: i32) -> (i32, i32) {
    %c0_i32 = arith.constant 0 : i32
    %c0_i32_0 = arith.constant 0 : i32
    return %c0_i32, %arg0 : i32, i32
  }
}

</mosaic_0001>

<llo_original>
// kernel: emg_classifier_forward.1
$region0: #{emg_classifier_forward.1}
  #allocation0 [shape = 'u32[]', space=smem, size = 0x4, offset = 0x4, fixed_abs, tag = 'smem constant byte address 0x4 - core index']
  #allocation1 [shape = 'u32[144,128]{1,0:T(1,128)}', space=vmem, size = 0x12000, scoped, tag = 'internal scratch']
  %s0 = inlined_call_operand.vmem [shape: bf16[16,128], index: 0, kind: input, shape index: {}]
  %s1 = inlined_call_operand.vmem [shape: bf16[128,16], index: 1, kind: input, shape index: {}]
  %s2 = inlined_call_operand.vmem [shape: f32[128,1], index: 2, kind: input, shape index: {}]
  %s3 = inlined_call_operand.vmem [shape: bf16[32,128], index: 3, kind: input, shape index: {}]
  %s4 = inlined_call_operand.vmem [shape: f32[32,1], index: 4, kind: input, shape index: {}]
  %s5 = inlined_call_operand.vmem [shape: bf16[8,32], index: 5, kind: input, shape index: {}]
  %s6 = inlined_call_operand.vmem [shape: f32[8,1], index: 6, kind: input, shape index: {}]
  %s7 = inlined_call_operand.vmem [shape: f32[8,128], index: 7, kind: output, shape index: {}]
  %s8 = sld [smem:[#allocation0]]
  $region38: #{emg_classifier_forward.1} parent=0
    _
  %s10 = ssub.s32 1, %s8
  %s11 = scalar_select 0, %s10, %s8
  // Predicated region
  $region2: #{emg_classifier_forward.1} parent=0 // pred_check
    _
  $region3: #{emg_classifier_forward.1} parent=0 // pred_check_branch
    %13 = sbr.rel (0) target = $region5
  $region4: #{emg_classifier_forward.1} parent=0 // pred_region
    _
  $region5: #{emg_classifier_forward.1} parent=0 // pred_fallthru
    _
  // Predicated region
  $region6: #{emg_classifier_forward.1} parent=0 // pred_check
    _
  $region7: #{emg_classifier_forward.1} parent=0 // pred_check_branch
    %15 = sbr.rel (0) target = $region9
  $region8: #{emg_classifier_forward.1} parent=0 // pred_region
    _
  $region9: #{emg_classifier_forward.1} parent=0 // pred_fallthru
    _
  // Predicated region
  $region10: #{emg_classifier_forward.1} parent=0 // pred_check
    _
  $region11: #{emg_classifier_forward.1} parent=0 // pred_check_branch
    %17 = sbr.rel (0) target = $region13
  $region12: #{emg_classifier_forward.1} parent=0 // pred_region
    _
  $region13: #{emg_classifier_forward.1} parent=0 // pred_fallthru
    _
  // Predicated region
  $region14: #{emg_classifier_forward.1} parent=0 // pred_check
    _
  $region15: #{emg_classifier_forward.1} parent=0 // pred_check_branch
    %19 = sbr.rel (0) target = $region17
  $region16: #{emg_classifier_forward.1} parent=0 // pred_region
    _
  $region17: #{emg_classifier_forward.1} parent=0 // pred_fallthru
    _
  // Predicated region
  $region18: #{emg_classifier_forward.1} parent=0 // pred_check
    _
  $region19: #{emg_classifier_forward.1} parent=0 // pred_check_branch
    %21 = sbr.rel (0) target = $region21
  $region20: #{emg_classifier_forward.1} parent=0 // pred_region
    _
  $region21: #{emg_classifier_forward.1} parent=0 // pred_fallthru
    _
  // Predicated region
  $region22: #{emg_classifier_forward.1} parent=0 // pred_check
    _
  $region23: #{emg_classifier_forward.1} parent=0 // pred_check_branch
    %23 = sbr.rel (0) target = $region25
  $region24: #{emg_classifier_forward.1} parent=0 // pred_region
    _
  $region25: #{emg_classifier_forward.1} parent=0 // pred_fallthru
    _
  // Predicated region
  $region26: #{emg_classifier_forward.1} parent=0 // pred_check
    _
  $region27: #{emg_classifier_forward.1} parent=0 // pred_check_branch
    %25 = sbr.rel (0) target = $region29
  $region28: #{emg_classifier_forward.1} parent=0 // pred_region
    _
  $region29: #{emg_classifier_forward.1} parent=0 // pred_fallthru
    _
  %v27 = vld [vmem:[%s0] sm:$0xf]
  %v28 = vld [vmem:[%s0 + $0x4] sm:$0xf]
  %v29 = vld [vmem:[%s1] sm:$0xf]
  %v30 = vld [vmem:[%s1 + $0x4] sm:$0xf]
  %v31 = vld [vmem:[%s1 + $0x8] sm:$0xf]
  %v32 = vld [vmem:[%s1 + $0xc] sm:$0xf]
  %v33 = vld [vmem:[%s1 + $0x10] sm:$0xf]
  %v34 = vld [vmem:[%s1 + $0x14] sm:$0xf]
  %v35 = vld [vmem:[%s1 + $0x18] sm:$0xf]
  %v36 = vld [vmem:[%s1 + $0x1c] sm:$0xf]
  %v37 = vld [vmem:[%s1 + $0x20] sm:$0xf]
  %v38 = vld [vmem:[%s1 + $0x24] sm:$0xf]
  %v39 = vld [vmem:[%s1 + $0x28] sm:$0xf]
  %v40 = vld [vmem:[%s1 + $0x2c] sm:$0xf]
  %v41 = vld [vmem:[%s1 + $0x30] sm:$0xf]
  %v42 = vld [vmem:[%s1 + $0x34] sm:$0xf]
  %v43 = vld [vmem:[%s1 + $0x38] sm:$0xf]
  %v44 = vld [vmem:[%s1 + $0x3c] sm:$0xf]
  %v45 = vld [vmem:[%s2] sm:$0xff]
  %v46 = vld [vmem:[%s2 + $0x8] sm:$0xff]
  %v47 = vld [vmem:[%s2 + $0x10] sm:$0xff]
  %v48 = vld [vmem:[%s2 + $0x18] sm:$0xff]
  %v49 = vld [vmem:[%s2 + $0x20] sm:$0xff]
  %v50 = vld [vmem:[%s2 + $0x28] sm:$0xff]
  %v51 = vld [vmem:[%s2 + $0x30] sm:$0xff]
  %v52 = vld [vmem:[%s2 + $0x38] sm:$0xff]
  %v53 = vld [vmem:[%s2 + $0x40] sm:$0xff]
  %v54 = vld [vmem:[%s2 + $0x48] sm:$0xff]
  %v55 = vld [vmem:[%s2 + $0x50] sm:$0xff]
  %v56 = vld [vmem:[%s2 + $0x58] sm:$0xff]
  %v57 = vld [vmem:[%s2 + $0x60] sm:$0xff]
  %v58 = vld [vmem:[%s2 + $0x68] sm:$0xff]
  %v59 = vld [vmem:[%s2 + $0x70] sm:$0xff]
  %v60 = vld [vmem:[%s2 + $0x78] sm:$0xff]
  %62 = vset.pattern.permute.xlu0 0
  %63 = vperm.xlu0 %62, %v45
  %v64 = vpop.permute.xlu0 %63
  %67 = vset.pattern.permute.xlu0 0
  %68 = vperm.xlu0 %67, %v46
  %v69 = vpop.permute.xlu0 %68
  %72 = vset.pattern.permute.xlu0 0
  %73 = vperm.xlu0 %72, %v47
  %v74 = vpop.permute.xlu0 %73
  %77 = vset.pattern.permute.xlu0 0
  %78 = vperm.xlu0 %77, %v48
  %v79 = vpop.permute.xlu0 %78
  %82 = vset.pattern.permute.xlu0 0
  %83 = vperm.xlu0 %82, %v49
  %v84 = vpop.permute.xlu0 %83
  %87 = vset.pattern.permute.xlu0 0
  %88 = vperm.xlu0 %87, %v50
  %v89 = vpop.permute.xlu0 %88
  %92 = vset.pattern.permute.xlu0 0
  %93 = vperm.xlu0 %92, %v51
  %v94 = vpop.permute.xlu0 %93
  %97 = vset.pattern.permute.xlu0 0
  %98 = vperm.xlu0 %97, %v52
  %v99 = vpop.permute.xlu0 %98
  %102 = vset.pattern.permute.xlu0 0
  %103 = vperm.xlu0 %102, %v53
  %v104 = vpop.permute.xlu0 %103
  %107 = vset.pattern.permute.xlu0 0
  %108 = vperm.xlu0 %107, %v54
  %v109 = vpop.permute.xlu0 %108
  %112 = vset.pattern.permute.xlu0 0
  %113 = vperm.xlu0 %112, %v55
  %v114 = vpop.permute.xlu0 %113
  %117 = vset.pattern.permute.xlu0 0
  %118 = vperm.xlu0 %117, %v56
  %v119 = vpop.permute.xlu0 %118
  %122 = vset.pattern.permute.xlu0 0
  %123 = vperm.xlu0 %122, %v57
  %v124 = vpop.permute.xlu0 %123
  %127 = vset.pattern.permute.xlu0 0
  %128 = vperm.xlu0 %127, %v58
  %v129 = vpop.permute.xlu0 %128
  %132 = vset.pattern.permute.xlu0 0
  %133 = vperm.xlu0 %132, %v59
  %v134 = vpop.permute.xlu0 %133
  %137 = vset.pattern.permute.xlu0 0
  %138 = vperm.xlu0 %137, %v60
  %v139 = vpop.permute.xlu0 %138
  %v157 = vunpack.c.l.b16 %v29
  %v158 = vunpack.c.l.b16 %v30
  %v159 = vunpack.c.l.b16 %v31
  %v160 = vunpack.c.l.b16 %v32
  %v161 = vunpack.c.l.b16 %v33
  %v162 = vunpack.c.l.b16 %v34
  %v163 = vunpack.c.l.b16 %v35
  %v164 = vunpack.c.l.b16 %v36
  %v165 = vunpack.c.l.b16 %v37
  %v166 = vunpack.c.l.b16 %v38
  %v167 = vunpack.c.l.b16 %v39
  %v168 = vunpack.c.l.b16 %v40
  %v169 = vunpack.c.l.b16 %v41
  %v170 = vunpack.c.l.b16 %v42
  %v171 = vunpack.c.l.b16 %v43
  %v172 = vunpack.c.l.b16 %v44
  %v173 = vpack.c.b16 %v158, %v157
  %v174 = vpack.c.b16 %v160, %v159
  %v175 = vpack.c.b16 %v162, %v161
  %v176 = vpack.c.b16 %v164, %v163
  %v177 = vpack.c.b16 %v166, %v165
  %v178 = vpack.c.b16 %v168, %v167
  %v179 = vpack.c.b16 %v170, %v169
  %v180 = vpack.c.b16 %v172, %v171
  %v183 = vunpack.c.l.b16 %v27
  %v184 = vunpack.c.l.b16 %v28
  %v185 = vpack.c.b16 %v184, %v183
  %vm187 = vcmask 130048
  %v189 = vsel %vm187, %v173, 0
  %v192 = vsel %vm187, %v174, 0
  %v195 = vsel %vm187, %v175, 0
  %v198 = vsel %vm187, %v176, 0
  %v201 = vsel %vm187, %v177, 0
  %v204 = vsel %vm187, %v178, 0
  %v207 = vsel %vm187, %v179, 0
  %v210 = vsel %vm187, %v180, 0
  %212 = vmatprep.subr.bf16.mxu0 0
  %213 = vmatpush1.bf16.msra.mxu0 0
  %214 = vmatprep.subr.bf16.mxu0 0
  %215 = vmatpush1.bf16.msra.mxu0 0
  %216 = vmatprep.subr.bf16.mxu0 0
  %217 = vmatpush1.bf16.msra.mxu0 0
  %218 = vmatprep.subr.bf16.mxu0 0
  %219 = vmatpush1.bf16.msra.mxu0 0
  %220 = vmatprep.subr.bf16.mxu0 0
  %221 = vmatpush1.bf16.msra.mxu0 0
  %222 = vmatprep.subr.bf16.mxu0 0
  %223 = vmatpush1.bf16.msra.mxu0 0
  %224 = vmatprep.subr.bf16.mxu0 0
  %225 = vmatpush1.bf16.msra.mxu0 0
  %226 = vmatprep.subr.bf16.mxu0 0
  %227 = vmatpush1.bf16.msra.mxu0 %v185
  %228 = vmatprep.subr.bf16.mxu0 0
  %229 = vmatpush2.bf16.msra.mxu0 0
  %230 = vmatprep.subr.bf16.mxu0 0
  %231 = vmatpush2.bf16.msra.mxu0 0
  %232 = vmatprep.subr.bf16.mxu0 0
  %233 = vmatpush2.bf16.msra.mxu0 0
  %234 = vmatprep.subr.bf16.mxu0 0
  %235 = vmatpush2.bf16.msra.mxu0 0
  %236 = vmatprep.subr.bf16.mxu0 0
  %237 = vmatpush2.bf16.msra.mxu0 0
  %238 = vmatprep.subr.bf16.mxu0 0
  %239 = vmatpush2.bf16.msra.mxu0 0
  %240 = vmatprep.subr.bf16.mxu0 0
  %241 = vmatpush2.bf16.msra.mxu0 0
  %242 = vmatprep.subr.bf16.mxu0 0
  %243 = vmatpush2.bf16.msra.mxu0 0
  %244 = vmatprep.mubr.bf16.mxu0 0
  %245 = vmatmul.mubr.bf16.gmra.mxu0 %v189
  %v246 = vpop.f32.mrf.mxu0
  %v247 = vadd.f32 %v64, %v246
  %v248 = vpop.f32.mrf.mxu0
  %v249 = vpop.f32.mrf.mxu0
  %v250 = vadd.f32 %v69, %v249
  %v251 = vpop.f32.mrf.mxu0
  %252 = vmatprep.mubr.bf16.mxu0 0
  %253 = vmatmul.mubr.bf16.gmra.mxu0 %v192
  %v254 = vpop.f32.mrf.mxu0
  %v255 = vadd.f32 %v74, %v254
  %v256 = vpop.f32.mrf.mxu0
  %v257 = vpop.f32.mrf.mxu0
  %v258 = vadd.f32 %v79, %v257
  %v259 = vpop.f32.mrf.mxu0
  %260 = vmatprep.mubr.bf16.mxu0 0
  %261 = vmatmul.mubr.bf16.gmra.mxu0 %v195
  %v262 = vpop.f32.mrf.mxu0
  %v263 = vadd.f32 %v84, %v262
  %v264 = vpop.f32.mrf.mxu0
  %v265 = vpop.f32.mrf.mxu0
  %v266 = vadd.f32 %v89, %v265
  %v267 = vpop.f32.mrf.mxu0
  %268 = vmatprep.mubr.bf16.mxu0 0
  %269 = vmatmul.mubr.bf16.gmra.mxu0 %v198
  %v270 = vpop.f32.mrf.mxu0
  %v271 = vadd.f32 %v94, %v270
  %v272 = vpop.f32.mrf.mxu0
  %v273 = vpop.f32.mrf.mxu0
  %v274 = vadd.f32 %v99, %v273
  %v275 = vpop.f32.mrf.mxu0
  %276 = vmatprep.mubr.bf16.mxu0 0
  %277 = vmatmul.mubr.bf16.gmra.mxu0 %v201
  %v278 = vpop.f32.mrf.mxu0
  %v279 = vadd.f32 %v104, %v278
  %v280 = vpop.f32.mrf.mxu0
  %v281 = vpop.f32.mrf.mxu0
  %v282 = vadd.f32 %v109, %v281
  %v283 = vpop.f32.mrf.mxu0
  %284 = vmatprep.mubr.bf16.mxu0 0
  %285 = vmatmul.mubr.bf16.gmra.mxu0 %v204
  %v286 = vpop.f32.mrf.mxu0
  %v287 = vadd.f32 %v114, %v286
  %v288 = vpop.f32.mrf.mxu0
  %v289 = vpop.f32.mrf.mxu0
  %v290 = vadd.f32 %v119, %v289
  %v291 = vpop.f32.mrf.mxu0
  %292 = vmatprep.mubr.bf16.mxu0 0
  %293 = vmatmul.mubr.bf16.gmra.mxu0 %v207
  %v294 = vpop.f32.mrf.mxu0
  %v295 = vadd.f32 %v124, %v294
  %v296 = vpop.f32.mrf.mxu0
  %v297 = vpop.f32.mrf.mxu0
  %v298 = vadd.f32 %v129, %v297
  %v299 = vpop.f32.mrf.mxu0
  %300 = vmatprep.mubr.bf16.mxu0 0
  %301 = vmatmul.mubr.bf16.gmra.mxu0 %v210
  %v302 = vpop.f32.mrf.mxu0
  %v303 = vadd.f32 %v134, %v302
  %v304 = vpop.f32.mrf.mxu0
  %v305 = vpop.f32.mrf.mxu0
  %v306 = vadd.f32 %v139, %v305
  %v307 = vpop.f32.mrf.mxu0
  %308 = vdwg.mxu0
  %v309 = vmax.f32 %v247, 0.0
  %v310 = vmax.f32 %v250, 0.0
  %v311 = vmax.f32 %v255, 0.0
  %v312 = vmax.f32 %v258, 0.0
  %v313 = vmax.f32 %v263, 0.0
  %v314 = vmax.f32 %v266, 0.0
  %v315 = vmax.f32 %v271, 0.0
  %v316 = vmax.f32 %v274, 0.0
  %v317 = vmax.f32 %v279, 0.0
  %v318 = vmax.f32 %v282, 0.0
  %v319 = vmax.f32 %v287, 0.0
  %v320 = vmax.f32 %v290, 0.0
  %v321 = vmax.f32 %v295, 0.0
  %v322 = vmax.f32 %v298, 0.0
  %v323 = vmax.f32 %v303, 0.0
  %v324 = vmax.f32 %v306, 0.0
  %v325 = vld [vmem:[%s3] sm:$0xf]
  %v326 = vld [vmem:[%s3 + $0x4] sm:$0xf]
  %v327 = vld [vmem:[%s3 + $0x8] sm:$0xf]
  %v328 = vld [vmem:[%s3 + $0xc] sm:$0xf]
  %v329 = vpack.c.bf16 %v310, %v309
  %v330 = vpack.c.bf16 %v312, %v311
  %v331 = vpack.c.bf16 %v314, %v313
  %v332 = vpack.c.bf16 %v316, %v315
  %v333 = vpack.c.bf16 %v318, %v317
  %v334 = vpack.c.bf16 %v320, %v319
  %v335 = vpack.c.bf16 %v322, %v321
  %v336 = vpack.c.bf16 %v324, %v323
  %v337 = vld [vmem:[%s4] sm:$0xff]
  %v338 = vld [vmem:[%s4 + $0x8] sm:$0xff]
  %v339 = vld [vmem:[%s4 + $0x10] sm:$0xff]
  %v340 = vld [vmem:[%s4 + $0x18] sm:$0xff]
  %342 = vset.pattern.permute.xlu0 0
  %343 = vperm.xlu0 %342, %v337
  %v344 = vpop.permute.xlu0 %343
  %347 = vset.pattern.permute.xlu0 0
  %348 = vperm.xlu0 %347, %v338
  %v349 = vpop.permute.xlu0 %348
  %352 = vset.pattern.permute.xlu0 0
  %353 = vperm.xlu0 %352, %v339
  %v354 = vpop.permute.xlu0 %353
  %357 = vset.pattern.permute.xlu0 0
  %358 = vperm.xlu0 %357, %v340
  %v359 = vpop.permute.xlu0 %358
  %v365 = vunpack.c.l.b16 %v325
  %v366 = vunpack.c.l.b16 %v326
  %v367 = vunpack.c.l.b16 %v327
  %v368 = vunpack.c.l.b16 %v328
  %v369 = vpack.c.b16 %v366, %v365
  %v370 = vpack.c.b16 %v368, %v367
  %373 = vmatprep.subr.bf16.mxu0 0
  %374 = vmatpush1.bf16.msra.mxu0 %v336
  %375 = vmatprep.subr.bf16.mxu0 0
  %376 = vmatpush1.bf16.msra.mxu0 %v335
  %377 = vmatprep.subr.bf16.mxu0 0
  %378 = vmatpush1.bf16.msra.mxu0 %v334
  %379 = vmatprep.subr.bf16.mxu0 0
  %380 = vmatpush1.bf16.msra.mxu0 %v333
  %381 = vmatprep.subr.bf16.mxu0 0
  %382 = vmatpush1.bf16.msra.mxu0 %v332
  %383 = vmatprep.subr.bf16.mxu0 0
  %384 = vmatpush1.bf16.msra.mxu0 %v331
  %385 = vmatprep.subr.bf16.mxu0 0
  %386 = vmatpush1.bf16.msra.mxu0 %v330
  %387 = vmatprep.subr.bf16.mxu0 0
  %388 = vmatpush1.bf16.msra.mxu0 %v329
  %389 = vmatprep.subr.bf16.mxu0 0
  %390 = vmatpush2.bf16.msra.mxu0 0
  %391 = vmatprep.subr.bf16.mxu0 0
  %392 = vmatpush2.bf16.msra.mxu0 0
  %393 = vmatprep.subr.bf16.mxu0 0
  %394 = vmatpush2.bf16.msra.mxu0 0
  %395 = vmatprep.subr.bf16.mxu0 0
  %396 = vmatpush2.bf16.msra.mxu0 0
  %397 = vmatprep.subr.bf16.mxu0 0
  %398 = vmatpush2.bf16.msra.mxu0 0
  %399 = vmatprep.subr.bf16.mxu0 0
  %400 = vmatpush2.bf16.msra.mxu0 0
  %401 = vmatprep.subr.bf16.mxu0 0
  %402 = vmatpush2.bf16.msra.mxu0 0
  %403 = vmatprep.subr.bf16.mxu0 0
  %404 = vmatpush2.bf16.msra.mxu0 0
  %405 = vmatprep.mubr.bf16.mxu0 0
  %406 = vmatmul.mubr.bf16.gmra.mxu0 %v369
  %v407 = vpop.f32.mrf.mxu0
  %v408 = vadd.f32 %v344, %v407
  %v409 = vpop.f32.mrf.mxu0
  %v410 = vpop.f32.mrf.mxu0
  %v411 = vadd.f32 %v349, %v410
  %v412 = vpop.f32.mrf.mxu0
  %413 = vmatprep.mubr.bf16.mxu0 0
  %414 = vmatmul.mubr.bf16.gmra.mxu0 %v370
  %v415 = vpop.f32.mrf.mxu0
  %v416 = vadd.f32 %v354, %v415
  %v417 = vpop.f32.mrf.mxu0
  %v418 = vpop.f32.mrf.mxu0
  %v419 = vadd.f32 %v359, %v418
  %v420 = vpop.f32.mrf.mxu0
  %421 = vdwg.mxu0
  %v422 = vmax.f32 %v408, 0.0
  %v423 = vmax.f32 %v411, 0.0
  %v424 = vmax.f32 %v416, 0.0
  %v425 = vmax.f32 %v419, 0.0
  %v426 = vld [vmem:[%s5] sm:$0xf]
  %v427 = vpack.c.bf16 %v423, %v422
  %v428 = vpack.c.bf16 %v425, %v424
  %v429 = vld [vmem:[%s6] sm:$0xff]
  %431 = vset.pattern.permute.xlu0 0
  %432 = vperm.xlu0 %431, %v429
  %v433 = vpop.permute.xlu0 %432
  %vm435 = vcmask 261120
  %v437 = vsel %vm435, %v426, 0
  %439 = vmatprep.subr.bf16.mxu0 0
  %440 = vmatpush1.bf16.msra.mxu0 0
  %441 = vmatprep.subr.bf16.mxu0 0
  %442 = vmatpush1.bf16.msra.mxu0 0
  %443 = vmatprep.subr.bf16.mxu0 0
  %444 = vmatpush1.bf16.msra.mxu0 0
  %445 = vmatprep.subr.bf16.mxu0 0
  %446 = vmatpush1.bf16.msra.mxu0 0
  %447 = vmatprep.subr.bf16.mxu0 0
  %448 = vmatpush1.bf16.msra.mxu0 0
  %449 = vmatprep.subr.bf16.mxu0 0
  %450 = vmatpush1.bf16.msra.mxu0 0
  %451 = vmatprep.subr.bf16.mxu0 0
  %452 = vmatpush1.bf16.msra.mxu0 %v428
  %453 = vmatprep.subr.bf16.mxu0 0
  %454 = vmatpush1.bf16.msra.mxu0 %v427
  %455 = vmatprep.subr.bf16.mxu0 0
  %456 = vmatpush2.bf16.msra.mxu0 0
  %457 = vmatprep.subr.bf16.mxu0 0
  %458 = vmatpush2.bf16.msra.mxu0 0
  %459 = vmatprep.subr.bf16.mxu0 0
  %460 = vmatpush2.bf16.msra.mxu0 0
  %461 = vmatprep.subr.bf16.mxu0 0
  %462 = vmatpush2.bf16.msra.mxu0 0
  %463 = vmatprep.subr.bf16.mxu0 0
  %464 = vmatpush2.bf16.msra.mxu0 0
  %465 = vmatprep.subr.bf16.mxu0 0
  %466 = vmatpush2.bf16.msra.mxu0 0
  %467 = vmatprep.subr.bf16.mxu0 0
  %468 = vmatpush2.bf16.msra.mxu0 0
  %469 = vmatprep.subr.bf16.mxu0 0
  %470 = vmatpush2.bf16.msra.mxu0 0
  %471 = vmatprep.mubr.bf16.mxu0 0
  %472 = vmatmul.mubr.bf16.gmra.mxu0 %v437
  %v473 = vpop.f32.mrf.mxu0
  %v474 = vadd.f32 %v433, %v473
  %v475 = vpop.f32.mrf.mxu0
  %v476 = vpop.f32.mrf.mxu0
  %v477 = vpop.f32.mrf.mxu0
  %478 = vdwg.mxu0
  %479 = vst [vmem:[%s7] sm:$0xff] %v474
  // Predicated region
  $region30: #{emg_classifier_forward.1} parent=0 // pred_check
    _
  $region31: #{emg_classifier_forward.1} parent=0 // pred_check_branch
    %481 = sbr.rel (0) target = $region33
  $region32: #{emg_classifier_forward.1} parent=0 // pred_region
    _
  $region33: #{emg_classifier_forward.1} parent=0 // pred_fallthru
    _
  // Predicated region
  $region34: #{emg_classifier_forward.1} parent=0 // pred_check
    _
  $region35: #{emg_classifier_forward.1} parent=0 // pred_check_branch
    %483 = sbr.rel (0) target = $region37
  $region36: #{emg_classifier_forward.1} parent=0 // pred_region
    _
  $region37: #{emg_classifier_forward.1} parent=0 // pred_fallthru
    _

</llo_original>
